<compile_context>
chip_gen: v5e
topology: v5e:2x2
jax: 0.10.0
libtpu: 0.0.40
codegen_flags: <defaults>
</compile_context>

<pallas_src>
import functools

import jax
import jax.numpy as jnp
from jax.experimental import pallas as pl
from jax.experimental.pallas import tpu as pltpu


def _round_up(x: int, m: int) -> int:
    return ((x + m - 1) // m) * m


def _lasso_matmul_kernel(x_ref, w_ref, o_ref, acc_ref):
    """One (tm, tn) output tile; accumulates over the K grid axis in f32."""
    k = pl.program_id(2)

    @pl.when(k == 0)
    def _():
        acc_ref[...] = jnp.zeros_like(acc_ref)

    # x tile: (tm, tk), w tile: (tn, tk)  ->  (tm, tn); contract dim 1 of both.
    acc_ref[...] += jax.lax.dot_general(
        x_ref[...],
        w_ref[...],
        dimension_numbers=(((1,), (1,)), ((), ())),
        preferred_element_type=jnp.float32,
    )

    @pl.when(k == pl.num_programs(2) - 1)
    def _():
        # Single wide store of the accumulator on the last K step only.
        o_ref[...] = acc_ref[...].astype(o_ref.dtype)


@functools.partial(jax.jit, static_argnames=("tm", "tn", "tk"))
def lasso_forward_pallas(x, weight, *, tm=None, tn=None, tk=None):
    """Pallas path: out = x @ weight.T.

    x:      (B, in_dim)       f32
    weight: (out_dim, in_dim) f32  (PyTorch nn.Linear layout, no transpose)
    """
    B, in_dim = x.shape
    out_dim, in_dim_w = weight.shape
    assert in_dim == in_dim_w

    # MXU-friendly tiles: tm multiple of 8 (sublanes), tn/tk multiples of 128
    # (lanes). Capped so double-buffered VMEM stays well under the v7x budget:
    # 2*(tm*tk + tn*tk + tm*tn)*4B  ~= 3 MiB at 256/256/512.
    tm = tm if tm is not None else min(256, _round_up(B, 8))
    tn = tn if tn is not None else min(256, _round_up(out_dim, 128))
    tk = tk if tk is not None else min(512, _round_up(in_dim, 128))

    Mp = _round_up(B, tm)
    Np = _round_up(out_dim, tn)
    Kp = _round_up(in_dim, tk)

    # Zero-pad up to the tile grid (zeros along K contribute nothing; extra
    # M/N rows/cols are sliced away below).
    xp = x
    if (Mp, Kp) != (B, in_dim):
        xp = jnp.pad(x, ((0, Mp - B), (0, Kp - in_dim)))
    wp = weight
    if (Np, Kp) != (out_dim, in_dim):
        wp = jnp.pad(weight, ((0, Np - out_dim), (0, Kp - in_dim)))

    grid = (Mp // tm, Np // tn, Kp // tk)

    cost = pl.CostEstimate(
        flops=2 * Mp * Np * Kp,
        transcendentals=0,
        bytes_accessed=4 * (grid[1] * Mp * Kp + grid[0] * Np * Kp + Mp * Np),
    )

    out = pl.pallas_call(
        _lasso_matmul_kernel,
        out_shape=jax.ShapeDtypeStruct((Mp, Np), jnp.float32),
        grid_spec=pltpu.PrefetchScalarGridSpec(
            num_scalar_prefetch=0,
            grid=grid,
            in_specs=[
                pl.BlockSpec((tm, tk), lambda i, j, k: (i, k)),   # x tile
                pl.BlockSpec((tn, tk), lambda i, j, k: (j, k)),   # weight tile
            ],
            out_specs=pl.BlockSpec((tm, tn), lambda i, j, k: (i, j)),
            scratch_shapes=[pltpu.VMEM((tm, tn), jnp.float32)],
        ),
        compiler_params=pltpu.CompilerParams(
            dimension_semantics=("parallel", "parallel", "arbitrary"),
            vmem_limit_bytes=32 * 1024 * 1024,
        ),
        cost_estimate=cost,
    )(xp, wp)

    if (Mp, Np) != (B, out_dim):
        out = out[:B, :out_dim]
    return out


def lasso_forward(x, weight, *, use_pallas=None):
    """Lasso forward: out = x @ weight.T (no bias).

    Dispatches tiny problems to plain XLA (custom-kernel launch + padding is
    pure overhead there); uses the tiled Pallas kernel otherwise.
    """
    B, in_dim = x.shape
    out_dim = weight.shape[0]
    if use_pallas is None:
        use_pallas = (B >= 128) and (out_dim >= 128) and (in_dim >= 128)
    if not use_pallas:
        return jax.lax.dot_general(
            x, weight,
            dimension_numbers=(((1,), (1,)), ((), ())),
            preferred_element_type=jnp.float32,
        )
    return lasso_forward_pallas(x, weight)


if __name__ == "__main__":
    key = jax.random.PRNGKey(0)

    # ---- Case 1: the module's small shapes (batch=8, in=32, out=16). --------
    batch, input_size, output_dim = 8, 32, 16
    k_x, k_w, k_x2, k_w2 = jax.random.split(key, 4)

    # torch.nn.Linear-style init: U(-1/sqrt(in), 1/sqrt(in)), no bias.
    bound = 1.0 / jnp.sqrt(jnp.float32(input_size))
    weight = jax.random.uniform(
        k_w, (output_dim, input_size), dtype=jnp.float32,
        minval=-bound, maxval=bound)
    x = jax.random.normal(k_x, (batch, input_size), dtype=jnp.float32)

    # Force the Pallas path so the kernel itself is exercised even at a size
    # where the dispatcher would normally hand it to XLA.
    out_small = lasso_forward_pallas(x, weight)
    out_small = jax.block_until_ready(out_small)
    ref_small = x @ weight.T
    assert out_small.shape == (batch, output_dim)
    assert jnp.allclose(out_small, ref_small, atol=1e-3, rtol=1e-3)

    # Dispatcher path (falls back to XLA at this size) must match too.
    out_disp = jax.block_until_ready(lasso_forward(x, weight))
    assert jnp.allclose(out_disp, ref_small, atol=1e-3, rtol=1e-3)

    # ---- Case 2: a larger shape that exercises the tiled grid (N and K > 1
    # tiles, f32 accumulator across K steps). ---------------------------------
    B2, in2, out2 = 256, 1024, 384
    bound2 = 1.0 / jnp.sqrt(jnp.float32(in2))
    w2 = jax.random.uniform(
        k_w2, (out2, in2), dtype=jnp.float32, minval=-bound2, maxval=bound2)
    x2 = jax.random.normal(k_x2, (B2, in2), dtype=jnp.float32)

    out_big = jax.block_until_ready(lasso_forward(x2, w2))  # Pallas path
    ref_big = x2 @ w2.T
    assert out_big.shape == (B2, out2)
    assert jnp.allclose(out_big, ref_big, atol=2e-3, rtol=2e-3)

    print("KERNEL_OK")
</pallas_src>

<mosaic_0001>
module attributes {stable_mosaic.version = 11 : i64} {
  func.func @_lasso_matmul_kernel(%arg0: i32, %arg1: i32, %arg2: i32, %arg3: memref<8x128xf32, #tpu.memory_space<vmem>>, %arg4: memref<128x128xf32, #tpu.memory_space<vmem>>, %arg5: memref<8x128xf32, #tpu.memory_space<vmem>>, %arg6: memref<8x128xf32, #tpu.memory_space<vmem>>) attributes {dimension_semantics = [#tpu.dimension_semantics<parallel>, #tpu.dimension_semantics<parallel>, #tpu.dimension_semantics<arbitrary>], iteration_bounds = array<i64: 1, 1, 1>, scalar_prefetch = 0 : i64, scratch_operands = 1 : i64, tpu.core_type = #tpu.core_type<tc>, window_params = [{transform_indices = @transform_0, window_bounds = array<i64: 8, 128>}, {transform_indices = @transform_1, window_bounds = array<i64: 128, 128>}, {transform_indices = @transform_2, window_bounds = array<i64: 8, 128>}]} {
    %c0_i32 = arith.constant 0 : i32
    %0 = arith.cmpi eq, %arg2, %c0_i32 : i32
    %1 = arith.extui %0 : i1 to i32
    %c0_i32_0 = arith.constant 0 : i32
    %2 = arith.cmpi ne, %1, %c0_i32_0 : i32
    scf.if %2 {
      %cst_10 = arith.constant 0.000000e+00 : f32
      %12 = vector.broadcast %cst_10 : f32 to vector<8x128xf32>
      %c0_11 = arith.constant 0 : index
      %c0_12 = arith.constant 0 : index
      %13 = vector.load %arg6[%c0_11, %c0_12] : memref<8x128xf32, #tpu.memory_space<vmem>>, vector<8x128xf32>
      tpu.vector_store %arg6[%c0_11, %c0_12], %12 {strides = array<i32>} : memref<8x128xf32, #tpu.memory_space<vmem>>, vector<8x128xf32>,
    } else {
    }
    %c0 = arith.constant 0 : index
    %c0_1 = arith.constant 0 : index
    %3 = vector.load %arg6[%c0, %c0_1] : memref<8x128xf32, #tpu.memory_space<vmem>>, vector<8x128xf32>
    %c0_2 = arith.constant 0 : index
    %c0_3 = arith.constant 0 : index
    %4 = vector.load %arg3[%c0_2, %c0_3] : memref<8x128xf32, #tpu.memory_space<vmem>>, vector<8x128xf32>
    %c0_4 = arith.constant 0 : index
    %c0_5 = arith.constant 0 : index
    %5 = vector.load %arg4[%c0_4, %c0_5] : memref<128x128xf32, #tpu.memory_space<vmem>>, vector<128x128xf32>
    %cst = arith.constant dense<0.000000e+00> : vector<8x128xf32>
    %6 = tpu.matmul %4, %5, %cst {dimension_numbers = #tpu.dot_dimension_numbers<[1], [1], [0], [0], [0, 0, 1, 0], [], []>} : vector<8x128xf32>, vector<128x128xf32>, vector<8x128xf32> -> vector<8x128xf32>
    %7 = arith.addf %3, %6 : vector<8x128xf32>
    %c0_6 = arith.constant 0 : index
    %c0_7 = arith.constant 0 : index
    %8 = vector.load %arg6[%c0_6, %c0_7] : memref<8x128xf32, #tpu.memory_space<vmem>>, vector<8x128xf32>
    tpu.vector_store %arg6[%c0_6, %c0_7], %7 {strides = array<i32>} : memref<8x128xf32, #tpu.memory_space<vmem>>, vector<8x128xf32>,
    %c0_i32_8 = arith.constant 0 : i32
    %9 = arith.cmpi eq, %arg2, %c0_i32_8 : i32
    %10 = arith.extui %9 : i1 to i32
    %c0_i32_9 = arith.constant 0 : i32
    %11 = arith.cmpi ne, %10, %c0_i32_9 : i32
    scf.if %11 {
      %c0_10 = arith.constant 0 : index
      %c0_11 = arith.constant 0 : index
      %12 = vector.load %arg6[%c0_10, %c0_11] : memref<8x128xf32, #tpu.memory_space<vmem>>, vector<8x128xf32>
      %c0_12 = arith.constant 0 : index
      %c0_13 = arith.constant 0 : index
      %13 = vector.load %arg5[%c0_12, %c0_13] : memref<8x128xf32, #tpu.memory_space<vmem>>, vector<8x128xf32>
      tpu.vector_store %arg5[%c0_12, %c0_13], %12 {strides = array<i32>} : memref<8x128xf32, #tpu.memory_space<vmem>>, vector<8x128xf32>,
    } else {
    }
    return
  }
  func.func @transform_0(%arg0: i32, %arg1: i32, %arg2: i32) -> (i32, i32) {
    %c0_i32 = arith.constant 0 : i32
    return %arg0, %arg2 : i32, i32
  }
  func.func @transform_1(%arg0: i32, %arg1: i32, %arg2: i32) -> (i32, i32) {
    %c0_i32 = arith.constant 0 : i32
    return %arg1, %arg2 : i32, i32
  }
  func.func @transform_2(%arg0: i32, %arg1: i32, %arg2: i32) -> (i32, i32) {
    %c0_i32 = arith.constant 0 : i32
    return %arg0, %arg1 : i32, i32
  }
}

</mosaic_0001>

<llo_original>
// kernel: lasso_forward_pallas.1
$region0: #{lasso_forward_pallas.1}
  #allocation0 [shape = 'u32[]', space=smem, size = 0x4, offset = 0x4, fixed_abs, tag = 'smem constant byte address 0x4 - core index']
  #allocation1 [shape = 'u32[72,128]{1,0:T(1,128)}', space=vmem, size = 0x9000, scoped, tag = 'internal scratch']
  #allocation2 [shape = 'f32[8,128]{1,0:T(8,128)}', space=vmem, size = 0x1000, scoped, tag = 'scratch operand']
  %s0 = inlined_call_operand.vmem [shape: f32[8,128], index: 0, kind: input, shape index: {}]
  %s1 = inlined_call_operand.vmem [shape: f32[128,128], index: 1, kind: input, shape index: {}]
  %s2 = inlined_call_operand.hbm [shape: f32[8,128], index: 2, kind: output, shape index: {}]
  %s3 = sld [smem:[#allocation0]]
  $region26: #{lasso_forward_pallas.1} parent=0
    _
  %s5 = ssub.s32 1, %s3
  %s6 = scalar_select 0, %s5, %s3
  $region1: #{lasso_forward_pallas.1} parent=0
    #allocation3 [shape = 'u8[4096]{0}', space=vmem, size = 0x1000, scoped, tag = 'output window, operand 0, single buffered']
    #allocation4 [shape = 's32[1]{0}', space=sflag, size = 0x4, scoped, tag = 'scoped memory for lasso_forward_pallas.1']
    %7 = vsyncpa [#allocation4], 0
    // Predicated region
    $region2: #{lasso_forward_pallas.1} parent=1 // pred_check
      _
    $region3: #{lasso_forward_pallas.1} parent=1 // pred_check_branch
      %9 = sbr.rel (0) target = $region5
    $region4: #{lasso_forward_pallas.1} parent=1 // pred_region
      _
    $region5: #{lasso_forward_pallas.1} parent=1 // pred_fallthru
      _
    // Predicated region
    $region6: #{lasso_forward_pallas.1} parent=1 // pred_check
      _
    $region7: #{lasso_forward_pallas.1} parent=1 // pred_check_branch
      %11 = sbr.rel (0) target = $region9
    $region8: #{lasso_forward_pallas.1} parent=1 // pred_region
      _
    $region9: #{lasso_forward_pallas.1} parent=1 // pred_fallthru
      _
    %p12 = scmp.eq.s32.totalorder 0, 0
    // Predicated region
    $region10: #{lasso_forward_pallas.1} parent=1 // pred_check
      %p13 = pneg %p12
    $region11: #{lasso_forward_pallas.1} parent=1 // pred_check_branch
      %15 = sbr.rel (%p13) target = $region13
    $region12: #{lasso_forward_pallas.1} parent=1 // pred_region
      %16 = vst [vmem:[#allocation2] sm:$0xff] 0.0
    $region13: #{lasso_forward_pallas.1} parent=1 // pred_fallthru
      _
    %v17 = vld [vmem:[#allocation2] sm:$0xff]
    %v18 = vld [vmem:[%s0] sm:$0xff]
    %v19 = vld [vmem:[%s1] sm:$0xff]
    %v20 = vld [vmem:[%s1 + $0x8] sm:$0xff]
    %v21 = vld [vmem:[%s1 + $0x10] sm:$0xff]
    %v22 = vld [vmem:[%s1 + $0x18] sm:$0xff]
    %v23 = vld [vmem:[%s1 + $0x20] sm:$0xff]
    %v24 = vld [vmem:[%s1 + $0x28] sm:$0xff]
    %v25 = vld [vmem:[%s1 + $0x30] sm:$0xff]
    %v26 = vld [vmem:[%s1 + $0x38] sm:$0xff]
    %v27 = vld [vmem:[%s1 + $0x40] sm:$0xff]
    %v28 = vld [vmem:[%s1 + $0x48] sm:$0xff]
    %v29 = vld [vmem:[%s1 + $0x50] sm:$0xff]
    %v30 = vld [vmem:[%s1 + $0x58] sm:$0xff]
    %v31 = vld [vmem:[%s1 + $0x60] sm:$0xff]
    %v32 = vld [vmem:[%s1 + $0x68] sm:$0xff]
    %v33 = vld [vmem:[%s1 + $0x70] sm:$0xff]
    %v34 = vld [vmem:[%s1 + $0x78] sm:$0xff]
    %35 = vmatpush.xpose.msra.mxu0 %v34
    %36 = vmatpush.xpose.msra.mxu0 %v33
    %37 = vmatpush.xpose.msra.mxu0 %v32
    %38 = vmatpush.xpose.msra.mxu0 %v31
    %39 = vmatpush.xpose.msra.mxu0 %v30
    %40 = vmatpush.xpose.msra.mxu0 %v29
    %41 = vmatpush.xpose.msra.mxu0 %v28
    %42 = vmatpush.xpose.msra.mxu0 %v27
    %43 = vmatpush.xpose.msra.mxu0 %v26
    %44 = vmatpush.xpose.msra.mxu0 %v25
    %45 = vmatpush.xpose.msra.mxu0 %v24
    %46 = vmatpush.xpose.msra.mxu0 %v23
    %47 = vmatpush.xpose.msra.mxu0 %v22
    %48 = vmatpush.xpose.msra.mxu0 %v21
    %49 = vmatpush.xpose.msra.mxu0 %v20
    %50 = vmatpush.xpose.msra.mxu0 %v19
    %51 = vmatmul.f32.gmra.mxu0 %v18
    %v52 = vpop.f32.mrf.mxu0
    %v53 = vadd.f32 0.0, %v52
    %54 = vdwg.mxu0
    %v55 = vadd.f32 %v17, %v53
    %56 = vst [vmem:[#allocation2] sm:$0xff] %v55
    // Predicated region
    $region14: #{lasso_forward_pallas.1} parent=1 // pred_check
      %p57 = pneg %p12
    $region15: #{lasso_forward_pallas.1} parent=1 // pred_check_branch
      %59 = sbr.rel (%p57) target = $region17
    $region16: #{lasso_forward_pallas.1} parent=1 // pred_region
      %v60 = vld [vmem:[#allocation2] sm:$0xff]
      %61 = vst [vmem:[#allocation3] sm:$0xff] %v60
    $region17: #{lasso_forward_pallas.1} parent=1 // pred_fallthru
      _
    // Predicated region
    $region18: #{lasso_forward_pallas.1} parent=1 // pred_check
      _
    $region19: #{lasso_forward_pallas.1} parent=1 // pred_check_branch
      %63 = sbr.rel (0) target = $region21
    $region20: #{lasso_forward_pallas.1} parent=1 // pred_region
      %65 = vsyncadd [#allocation4], 0
      %s67 = sshll.u32 [#allocation3], 4
      %s68 = int_to_ptr.vmem [resolvable:$true] %s67
      %s69 = sshll.u32 %s2, 4
      %s70 = int_to_ptr.hbm [resolvable:$true] %s69
      %72 = dma.vmem_to_hbm [thread:$0]  %s68, 128, %s70, [#allocation4]
    $region21: #{lasso_forward_pallas.1} parent=1 // pred_fallthru
      _
    // Predicated region
    $region22: #{lasso_forward_pallas.1} parent=1 // pred_check
      _
    $region23: #{lasso_forward_pallas.1} parent=1 // pred_check_branch
      %74 = sbr.rel (0) target = $region25
    $region24: #{lasso_forward_pallas.1} parent=1 // pred_region
      %76 = dma.done [#allocation4], 128
    $region25: #{lasso_forward_pallas.1} parent=1 // pred_fallthru
      _
    %77 = vsyncpa [#allocation4], 1

</llo_original>
